<compile_context>
chip_gen: v7x
topology: tpu7x:2x2x1
jax: 0.10.0
libtpu: 0.0.40
codegen_flags: <defaults>
</compile_context>

<pallas_src>
import jax
import jax.numpy as jnp
import numpy as np
from jax.experimental import pallas as pl
from jax.experimental.pallas import tpu as pltpu


# ---------------------------------------------------------------------------
# Kernels
# ---------------------------------------------------------------------------
def _self_attention_kernel_nb(xt_ref, w_ref, b_ref, o_ref):
    """Lane-dense transposed layout (used when n_variable < 128).

    xt_ref: (N, TB)  tile of x^T (f32), batch on the lane axis.
    w_ref:  (N, N)   Linear weight in PyTorch (out, in) layout, resident.
    b_ref:  (N, 1)   Linear bias, resident.
    o_ref:  (N, TB)  output tile (out^T).
    """
    xt = xt_ref[...]                                       # load the tile once
    # Linear: energy^T = W @ x^T + b   (f32 MXU, exact parity with the reference)
    energy = jnp.dot(w_ref[...], xt, preferred_element_type=jnp.float32) + b_ref[...]
    energy = jax.nn.sigmoid(energy)                        # EUP logistic
    # Softmax over the feature axis (dim=1 of (B, N)) == axis 0 of the transposed tile.
    # sigmoid output is in (0, 1) -> exp in (1, e): no max-subtraction needed.
    p = jnp.exp(energy)
    denom = jnp.sum(p, axis=0, keepdims=True)              # (1, TB), cross-sublane reduce
    weights = p * pl.reciprocal(denom, approx=True)        # EUP vrcp
    o_ref[...] = (xt * weights).astype(o_ref.dtype)        # gate; unmasked lane-dense store


def _self_attention_kernel_bn(x_ref, wt_ref, b_ref, o_ref):
    """Natural (B, N) layout (used when n_variable >= 128, already lane-aligned).

    x_ref:  (TB, N) tile of inputs (f32).
    wt_ref: (N, N)  transposed Linear weight (W^T), resident.
    b_ref:  (1, N)  Linear bias, resident.
    """
    x = x_ref[...]                                         # load the tile once
    energy = jnp.dot(x, wt_ref[...], preferred_element_type=jnp.float32) + b_ref[...]
    energy = jax.nn.sigmoid(energy)
    p = jnp.exp(energy)
    denom = jnp.sum(p, axis=-1, keepdims=True)
    weights = p * pl.reciprocal(denom, approx=True)
    o_ref[...] = (x * weights).astype(o_ref.dtype)


# ---------------------------------------------------------------------------
# Tiling / VMEM sizing helpers
# ---------------------------------------------------------------------------
def _vmem_capacity_bytes():
    """Per-core VMEM capacity; conservative 64 MiB (v7x) fallback if the query fails."""
    try:
        return int(pltpu.get_tpu_info().vmem_capacity_bytes)
    except Exception:
        return 64 << 20


def _pick_batch_tile(B, row_bytes, resident_bytes, vmem_capacity, align):
    """Pick the batch-tile length by BYTES.

    - If the whole problem fits the VMEM budget and is below the ~8 MiB target,
      run a single grid step (no forced split on single-TC v5e/v6e).
    - Otherwise pick the largest divisor of B (multiple of `align`) whose streamed
      x/out tiles stay around the MiB-class target and inside the VMEM budget.
    """
    slack = 2 << 20
    # Resident weight + bias counted twice (default double-buffering of constant blocks).
    # TODO(synk): pipeline_mode=pl.Buffered(1) on the resident specs would halve this
    # once verified on the target toolchain (matters for large n_variable on v7x).
    tile_budget = max(vmem_capacity - 2 * resident_bytes - slack, 4 << 20)
    max_rows = max(tile_budget // (4 * row_bytes), align)   # 2 bufs each for x and out
    target_rows = max((8 << 20) // row_bytes, align)        # ~8 MiB per streamed tile
    upper = min(max_rows, target_rows)
    if B <= upper:
        return B                                            # single grid step
    t = (upper // align) * align
    while t >= align:
        if B % t == 0:
            return t
        t -= align
    return B                                                # no aligned divisor: one step


# ---------------------------------------------------------------------------
# Public wrapper
# ---------------------------------------------------------------------------
@jax.jit
def self_attention_pallas(x, weight, bias):
    """Forward pass of the PyTorch `self_attention` module.

    x:      (B, N) f32 inputs.
    weight: (N, N) f32 Linear weight, PyTorch (out, in) convention.
    bias:   (N,)   f32 Linear bias.
    Returns (B, N) f32 gated outputs.
    """
    B, N = x.shape
    vmem_cap = _vmem_capacity_bytes()
    resident = N * N * 4 + max(N, 128) * 4                  # f32 weight + bias
    row_bytes = N * 4                                       # bytes per batch element (f32)

    cost = pl.CostEstimate(
        flops=2 * B * N * N,
        transcendentals=2 * B * N,                          # sigmoid + exp
        bytes_accessed=2 * B * N * 4 + N * N * 4 + N * 4,
    )
    # TODO(synk): for n_variable so large that the f32 weight does not fit VMEM,
    # the Linear would additionally need tiling over the feature axis.

    if N < 128:
        # ---- lane-dense transposed layout: batch on the 128-lane axis ----
        align = 128
        tile = _pick_batch_tile(B, row_bytes, resident, vmem_cap, align)
        needed = 2 * resident + 4 * tile * row_bytes + (2 << 20)
        vmem_limit = int(min(max(needed, 16 << 20), vmem_cap - (8 << 20)))

        xt = x.T                                            # wrapper-side layout plumbing
        b2 = bias.reshape(N, 1)

        out_t = pl.pallas_call(
            _self_attention_kernel_nb,
            out_shape=jax.ShapeDtypeStruct((N, B), x.dtype),
            grid_spec=pltpu.PrefetchScalarGridSpec(
                num_scalar_prefetch=0,
                grid=(B // tile,),
                in_specs=[
                    pl.BlockSpec((N, tile), lambda i: (0, i)),   # x^T tile (streamed)
                    pl.BlockSpec((N, N), lambda i: (0, 0)),      # W (resident)
                    pl.BlockSpec((N, 1), lambda i: (0, 0)),      # bias (resident)
                ],
                out_specs=pl.BlockSpec((N, tile), lambda i: (0, i)),
            ),
            compiler_params=pltpu.CompilerParams(
                dimension_semantics=("parallel",),
                vmem_limit_bytes=vmem_limit,
            ),
            cost_estimate=cost,
        )(xt, weight, b2)
        return out_t.T

    # ---- natural (B, N) layout: N already a full 128-lane multiple candidate ----
    align = 8
    tile = _pick_batch_tile(B, row_bytes, resident, vmem_cap, align)
    needed = 2 * resident + 4 * tile * row_bytes + (2 << 20)
    vmem_limit = int(min(max(needed, 16 << 20), vmem_cap - (8 << 20)))

    wt = weight.T                                           # (in, out) layout for x @ W^T
    b2 = bias.reshape(1, N)

    return pl.pallas_call(
        _self_attention_kernel_bn,
        out_shape=jax.ShapeDtypeStruct((B, N), x.dtype),
        grid_spec=pltpu.PrefetchScalarGridSpec(
            num_scalar_prefetch=0,
            grid=(B // tile,),
            in_specs=[
                pl.BlockSpec((tile, N), lambda i: (i, 0)),       # x tile (streamed)
                pl.BlockSpec((N, N), lambda i: (0, 0)),          # W^T (resident)
                pl.BlockSpec((1, N), lambda i: (0, 0)),          # bias (resident)
            ],
            out_specs=pl.BlockSpec((tile, N), lambda i: (i, 0)),
        ),
        compiler_params=pltpu.CompilerParams(
            dimension_semantics=("parallel",),
            vmem_limit_bytes=vmem_limit,
        ),
        cost_estimate=cost,
    )(x, wt, b2)


def self_attention_ref(x, weight, bias):
    energy = jax.nn.sigmoid(x @ weight.T + bias)
    weights = jax.nn.softmax(energy, axis=1)
    return x * weights


if __name__ == "__main__":
    B, N = 64, 32  # batch, n_variable (small demo shapes; N < 128 -> transposed path)

    key = jax.random.PRNGKey(0)
    kx, kw, kb = jax.random.split(key, 3)

    # Deterministic parameter init mimicking nn.Linear default (uniform +/- 1/sqrt(N)).
    bound = 1.0 / np.sqrt(N)
    weight = jax.random.uniform(kw, (N, N), jnp.float32, -bound, bound)
    bias = jax.random.uniform(kb, (N,), jnp.float32, -bound, bound)
    x = jax.random.normal(kx, (B, N), jnp.float32)

    out = jax.block_until_ready(self_attention_pallas(x, weight, bias))

    ref = self_attention_ref(x, weight, bias)
    # f32 matmul keeps strict parity; tolerance covers the approx-reciprocal softmax denom.
    np.testing.assert_allclose(np.asarray(out), np.asarray(ref), rtol=1e-2, atol=1e-2)

    print("KERNEL_OK")
</pallas_src>

<mosaic_0001>
module attributes {stable_mosaic.version = 11 : i64} {
  func.func @_self_attention_kernel_nb(%arg0: i32, %arg1: memref<32x64xf32, #tpu.memory_space<vmem>>, %arg2: memref<32x32xf32, #tpu.memory_space<vmem>>, %arg3: memref<32x1xf32, #tpu.memory_space<vmem>>, %arg4: memref<32x64xf32, #tpu.memory_space<vmem>>) attributes {dimension_semantics = [#tpu.dimension_semantics<parallel>], iteration_bounds = array<i64: 1>, scalar_prefetch = 0 : i64, scratch_operands = 0 : i64, tpu.core_type = #tpu.core_type<tc>, window_params = [{transform_indices = @transform_0, window_bounds = array<i64: 32, 64>}, {pipeline_mode = #tpu.pipeline_mode<synchronous>, transform_indices = @transform_1, window_bounds = array<i64: 32, 32>}, {pipeline_mode = #tpu.pipeline_mode<synchronous>, transform_indices = @transform_2, window_bounds = array<i64: 32, 1>}, {transform_indices = @transform_3, window_bounds = array<i64: 32, 64>}]} {
    %c0 = arith.constant 0 : index
    %c0_0 = arith.constant 0 : index
    %0 = vector.load %arg1[%c0, %c0_0] : memref<32x64xf32, #tpu.memory_space<vmem>>, vector<32x64xf32>
    %c0_1 = arith.constant 0 : index
    %c0_2 = arith.constant 0 : index
    %1 = vector.load %arg2[%c0_1, %c0_2] : memref<32x32xf32, #tpu.memory_space<vmem>>, vector<32x32xf32>
    %cst = arith.constant dense<0.000000e+00> : vector<32x64xf32>
    %2 = tpu.matmul %1, %0, %cst {dimension_numbers = #tpu.dot_dimension_numbers<[1], [0], [0], [1], [0, 0, 1, 1], [], []>} : vector<32x32xf32>, vector<32x64xf32>, vector<32x64xf32> -> vector<32x64xf32>
    %c0_3 = arith.constant 0 : index
    %c0_4 = arith.constant 0 : index
    %3 = vector.load %arg3[%c0_3, %c0_4] : memref<32x1xf32, #tpu.memory_space<vmem>>, vector<32x1xf32>
    %4 = vector.broadcast %3 : vector<32x1xf32> to vector<32x64xf32>
    %5 = arith.addf %2, %4 : vector<32x64xf32>
    %6 = arith.negf %5 : vector<32x64xf32>
    %7 = math.exp %6 : vector<32x64xf32>
    %cst_5 = arith.constant 1.000000e+00 : f32
    %8 = vector.broadcast %cst_5 : f32 to vector<32x64xf32>
    %9 = arith.addf %8, %7 : vector<32x64xf32>
    %10 = arith.divf %8, %9 : vector<32x64xf32>
    %11 = math.exp %10 : vector<32x64xf32>
    %cst_6 = arith.constant dense<0.000000e+00> : vector<64xf32>
    %12 = vector.multi_reduction <add>, %11, %cst_6 [0] : vector<32x64xf32> to vector<64xf32>
    %13 = vector.shape_cast %12 : vector<64xf32> to vector<1x64xf32>
    %14 = tpu.reciprocal %13 {approx = true} : vector<1x64xf32> -> vector<1x64xf32>
    %15 = vector.broadcast %14 : vector<1x64xf32> to vector<32x64xf32>
    %16 = arith.mulf %11, %15 : vector<32x64xf32>
    %17 = arith.mulf %0, %16 : vector<32x64xf32>
    %c0_7 = arith.constant 0 : index
    %c0_8 = arith.constant 0 : index
    %18 = vector.load %arg4[%c0_7, %c0_8] : memref<32x64xf32, #tpu.memory_space<vmem>>, vector<32x64xf32>
    tpu.vector_store %arg4[%c0_7, %c0_8], %17 {strides = array<i32>} : memref<32x64xf32, #tpu.memory_space<vmem>>, vector<32x64xf32>,
    return
  }
  func.func @transform_0(%arg0: i32) -> (i32, i32) {
    %c0_i32 = arith.constant 0 : i32
    %c0_i32_0 = arith.constant 0 : i32
    return %c0_i32, %arg0 : i32, i32
  }
  func.func @transform_1(%arg0: i32) -> (i32, i32) {
    %c0_i32 = arith.constant 0 : i32
    %c0_i32_0 = arith.constant 0 : i32
    %c0_i32_1 = arith.constant 0 : i32
    return %c0_i32, %c0_i32_0 : i32, i32
  }
  func.func @transform_2(%arg0: i32) -> (i32, i32) {
    %c0_i32 = arith.constant 0 : i32
    %c0_i32_0 = arith.constant 0 : i32
    %c0_i32_1 = arith.constant 0 : i32
    return %c0_i32, %c0_i32_0 : i32, i32
  }
  func.func @transform_3(%arg0: i32) -> (i32, i32) {
    %c0_i32 = arith.constant 0 : i32
    %c0_i32_0 = arith.constant 0 : i32
    return %c0_i32, %arg0 : i32, i32
  }
}

</mosaic_0001>

<llo_original>
// kernel: self_attention_pallas.1
$region0: #{self_attention_pallas.1}
  #allocation0 [shape = 'u32[]', space=smem, size = 0x4, offset = 0x4, fixed_abs, tag = 'smem constant byte address 0x4 - core index']
  #allocation1 [shape = 'u32[144,128]{1,0:T(1,128)}', space=vmem, size = 0x12000, scoped, tag = 'internal scratch']
  %s0 = inlined_call_operand.vmem [shape: f32[32,64], index: 0, kind: input, shape index: {}]
  %s1 = inlined_call_operand.hbm [shape: f32[32,32], index: 1, kind: input, shape index: {}]
  %s2 = inlined_call_operand.vmem [shape: f32[32,1], index: 2, kind: input, shape index: {}]
  %s3 = inlined_call_operand.hbm [shape: f32[32,64], index: 3, kind: output, shape index: {}]
  %s4 = sld [smem:[#allocation0]]
  $region26: #{self_attention_pallas.1} parent=0
    _
  %s6 = ssub.s32 1, %s4
  %s7 = scalar_select 0, %s6, %s4
  $region1: #{self_attention_pallas.1} parent=0
    #allocation2 [shape = 'u8[16384]{0}', space=vmem, size = 0x4000, scoped, tag = 'input window, operand 1, single buffered']
    #allocation3 [shape = 's32[1]{0}', space=sflag, size = 0x4, scoped, tag = 'scoped memory for self_attention_pallas.1']
    #allocation4 [shape = 's32[1]{0}', space=sflag, size = 0x4, scoped, tag = 'scoped memory for self_attention_pallas.1']
    #allocation5 [shape = 'u8[16384]{0}', space=vmem, size = 0x4000, scoped, tag = 'output window, operand 0, single buffered']
    %8 = vsyncpa [#allocation3], 0
    %9 = vsyncpa [#allocation4], 0
    // Predicated region
    $region2: #{self_attention_pallas.1} parent=1 // pred_check
      _
    $region3: #{self_attention_pallas.1} parent=1 // pred_check_branch
      %11 = sbr.rel (0) target = $region5
    $region4: #{self_attention_pallas.1} parent=1 // pred_region
      _
    $region5: #{self_attention_pallas.1} parent=1 // pred_fallthru
      _
    // Predicated region
    $region6: #{self_attention_pallas.1} parent=1 // pred_check
      _
    $region7: #{self_attention_pallas.1} parent=1 // pred_check_branch
      %13 = sbr.rel (0) target = $region9
    $region8: #{self_attention_pallas.1} parent=1 // pred_region
      %s15 = ssub.s32 512, 512
      %16 = vsyncadd [#allocation3], %s15
      %s17 = sshll.u32 [#allocation2], 4
      %s18 = int_to_ptr.vmem [resolvable:$true] %s17
      %23 = dma.hbm_to_vmem [thread:$0]  %s1, 512, %s18, [#allocation3], 128, 128, 8
    $region9: #{self_attention_pallas.1} parent=1 // pred_fallthru
      _
    // Predicated region
    $region10: #{self_attention_pallas.1} parent=1 // pred_check
      _
    $region11: #{self_attention_pallas.1} parent=1 // pred_check_branch
      %25 = sbr.rel (0) target = $region13
    $region12: #{self_attention_pallas.1} parent=1 // pred_region
      _
    $region13: #{self_attention_pallas.1} parent=1 // pred_fallthru
      _
    // Predicated region
    $region14: #{self_attention_pallas.1} parent=1 // pred_check
      _
    $region15: #{self_attention_pallas.1} parent=1 // pred_check_branch
      %27 = sbr.rel (0) target = $region17
    $region16: #{self_attention_pallas.1} parent=1 // pred_region
      %28 = dma.done [#allocation3], 512
    $region17: #{self_attention_pallas.1} parent=1 // pred_fallthru
      _
    %v29 = vld [vmem:[%s0] sm:$0xff]
    %v30 = vld [vmem:[%s0 + $0x8] sm:$0xff]
    %v31 = vld [vmem:[%s0 + $0x10] sm:$0xff]
    %v32 = vld [vmem:[%s0 + $0x18] sm:$0xff]
    %v33 = vld [vmem:[#allocation2] sm:$0xff]
    %v34 = vld [vmem:[#allocation2 + $0x8] sm:$0xff]
    %v35 = vld [vmem:[#allocation2 + $0x10] sm:$0xff]
    %v36 = vld [vmem:[#allocation2 + $0x18] sm:$0xff]
    %v37 = vld [vmem:[%s2] sm:$0xff]
    %v38 = vld [vmem:[%s2 + $0x8] sm:$0xff]
    %v39 = vld [vmem:[%s2 + $0x10] sm:$0xff]
    %v40 = vld [vmem:[%s2 + $0x18] sm:$0xff]
    %42 = vset.pattern.permute.xlu0 0
    %43 = vperm.xlu0 %42, %v37
    %v44 = vpop.permute.xlu0 %43
    %47 = vset.pattern.permute.xlu0 0
    %48 = vperm.xlu0 %47, %v38
    %v49 = vpop.permute.xlu0 %48
    %52 = vset.pattern.permute.xlu0 0
    %53 = vperm.xlu0 %52, %v39
    %v54 = vpop.permute.xlu0 %53
    %57 = vset.pattern.permute.xlu0 0
    %58 = vperm.xlu0 %57, %v40
    %v59 = vpop.permute.xlu0 %58
    %vm61 = vcmask 261120
    %v63 = vsel %vm61, %v33, 0
    %v66 = vsel %vm61, %v34, 0
    %v69 = vsel %vm61, %v35, 0
    %v72 = vsel %vm61, %v36, 0
    %74 = vmatprep.subr.mxu0 0.0
    %75 = vmatpush1.msra.mxu0 %v29
    %76 = vmatprep.subr.mxu0 0.0
    %77 = vmatpush1.msra.mxu0 %v30
    %78 = vmatprep.subr.mxu0 0.0
    %79 = vmatpush1.msra.mxu0 %v31
    %80 = vmatprep.subr.mxu0 0.0
    %81 = vmatpush1.msra.mxu0 %v32
    %82 = vmatprep.subr.mxu0 0.0
    %83 = vmatpush1.msra.mxu0 0.0
    %84 = vmatprep.subr.mxu0 0.0
    %85 = vmatpush1.msra.mxu0 0.0
    %86 = vmatprep.subr.mxu0 0.0
    %87 = vmatpush1.msra.mxu0 0.0
    %88 = vmatprep.subr.mxu0 0.0
    %89 = vmatpush1.msra.mxu0 0.0
    %90 = vmatprep.subr.mxu0 0.0
    %91 = vmatpush1.msra.mxu0 0.0
    %92 = vmatprep.subr.mxu0 0.0
    %93 = vmatpush1.msra.mxu0 0.0
    %94 = vmatprep.subr.mxu0 0.0
    %95 = vmatpush1.msra.mxu0 0.0
    %96 = vmatprep.subr.mxu0 0.0
    %97 = vmatpush1.msra.mxu0 0.0
    %98 = vmatprep.subr.mxu0 0.0
    %99 = vmatpush1.msra.mxu0 0.0
    %100 = vmatprep.subr.mxu0 0.0
    %101 = vmatpush1.msra.mxu0 0.0
    %102 = vmatprep.subr.mxu0 0.0
    %103 = vmatpush1.msra.mxu0 0.0
    %104 = vmatprep.subr.mxu0 0.0
    %105 = vmatpush1.msra.mxu0 0.0
    %106 = vmatprep.subr.mxu0 0.0
    %107 = vmatpush1.msra.mxu0 0.0
    %108 = vmatprep.subr.mxu0 0.0
    %109 = vmatpush1.msra.mxu0 0.0
    %110 = vmatprep.subr.mxu0 0.0
    %111 = vmatpush1.msra.mxu0 0.0
    %112 = vmatprep.subr.mxu0 0.0
    %113 = vmatpush1.msra.mxu0 0.0
    %114 = vmatprep.subr.mxu0 0.0
    %115 = vmatpush1.msra.mxu0 0.0
    %116 = vmatprep.subr.mxu0 0.0
    %117 = vmatpush1.msra.mxu0 0.0
    %118 = vmatprep.subr.mxu0 0.0
    %119 = vmatpush1.msra.mxu0 0.0
    %120 = vmatprep.subr.mxu0 0.0
    %121 = vmatpush1.msra.mxu0 0.0
    %122 = vmatprep.subr.mxu0 0.0
    %123 = vmatpush1.msra.mxu0 0.0
    %124 = vmatprep.subr.mxu0 0.0
    %125 = vmatpush1.msra.mxu0 0.0
    %126 = vmatprep.subr.mxu0 0.0
    %127 = vmatpush1.msra.mxu0 0.0
    %128 = vmatprep.subr.mxu0 0.0
    %129 = vmatpush1.msra.mxu0 0.0
    %130 = vmatprep.subr.mxu0 0.0
    %131 = vmatpush1.msra.mxu0 0.0
    %132 = vmatprep.subr.mxu0 0.0
    %133 = vmatpush1.msra.mxu0 0.0
    %134 = vmatprep.subr.mxu0 0.0
    %135 = vmatpush1.msra.mxu0 0.0
    %136 = vmatprep.subr.mxu0 0.0
    %137 = vmatpush1.msra.mxu0 0.0
    %138 = vmatprep.mubr.f32.mxu0 0.0
    %139 = vmatmul.mubr.f32.gmra.mrb[0].mxu0 %v63
    %v140 = vpop.f32.mrb[0].mxu0
    %v141 = vadd.f32 %v44, %v140
    %v142 = vpop.f32.mrb[0].mxu0
    %143 = vmatprep.mubr.f32.mxu0 0.0
    %144 = vmatmul.mubr.f32.gmra.mrb[0].mxu0 %v66
    %v145 = vpop.f32.mrb[0].mxu0
    %v146 = vadd.f32 %v49, %v145
    %v147 = vpop.f32.mrb[0].mxu0
    %148 = vmatprep.mubr.f32.mxu0 0.0
    %149 = vmatmul.mubr.f32.gmra.mrb[0].mxu0 %v69
    %v150 = vpop.f32.mrb[0].mxu0
    %v151 = vadd.f32 %v54, %v150
    %v152 = vpop.f32.mrb[0].mxu0
    %153 = vmatprep.mubr.f32.mxu0 0.0
    %154 = vmatmul.mubr.f32.gmra.mrb[0].mxu0 %v72
    %v155 = vpop.f32.mrb[0].mxu0
    %v156 = vadd.f32 %v59, %v155
    %v157 = vpop.f32.mrb[0].mxu0
    %158 = vdwg.mxu0
    %v159 = vxor.u32 %v141, 2147483648
    %v160 = vxor.u32 %v146, 2147483648
    %v161 = vxor.u32 %v151, 2147483648
    %v162 = vxor.u32 %v156, 2147483648
    %v163 = vmul.f32 %v159, 1.442695
    %v164 = vpow.pop %v163
    %v165 = vmul.f32 %v160, 1.442695
    %v166 = vpow.pop %v165
    %v167 = vmul.f32 %v161, 1.442695
    %v168 = vpow.pop %v167
    %v169 = vmul.f32 %v162, 1.442695
    %v170 = vpow.pop %v169
    %v171 = vadd.f32 %v164, 1.0
    %v172 = vadd.f32 %v166, 1.0
    %v173 = vadd.f32 %v168, 1.0
    %v174 = vadd.f32 %v170, 1.0
    %v175 = vrcp.pop %v171
    %v176 = vmul.f32 1.0, %v175
    %v177 = vrcp.pop %v172
    %v178 = vmul.f32 1.0, %v177
    %v179 = vrcp.pop %v173
    %v180 = vmul.f32 1.0, %v179
    %v181 = vrcp.pop %v174
    %v182 = vmul.f32 1.0, %v181
    %v183 = vmul.f32 %v176, 1.442695
    %v184 = vpow.pop %v183
    %v185 = vmul.f32 %v178, 1.442695
    %v186 = vpow.pop %v185
    %v187 = vmul.f32 %v180, 1.442695
    %v188 = vpow.pop %v187
    %v189 = vmul.f32 %v182, 1.442695
    %v190 = vpow.pop %v189
    %vm191 = vcmask 523264
    %v192 = vsel %vm191, %v184, 0.0
    %v193 = vsel %vm191, %v186, 0.0
    %v194 = vadd.f32 %v192, %v193
    %v195 = vsel %vm191, %v188, 0.0
    %v196 = vadd.f32 %v194, %v195
    %v197 = vsel %vm191, %v190, 0.0
    %v198 = vadd.f32 %v196, %v197
    %v199 = vrot.slane %v198, 4
    %v200 = vadd.f32 %v198, %v199
    %v201 = vrot.slane %v200, 2
    %v202 = vadd.f32 %v200, %v201
    %v203 = vrot.slane %v202, 1
    %v204 = vadd.f32 %v202, %v203
    %v205 = vrcp.pop %v204
    %v206 = vmul.f32 %v184, %v205
    %v207 = vmul.f32 %v186, %v205
    %v208 = vmul.f32 %v188, %v205
    %v209 = vmul.f32 %v190, %v205
    %v210 = vmul.f32 %v29, %v206
    %v211 = vmul.f32 %v30, %v207
    %v212 = vmul.f32 %v31, %v208
    %v213 = vmul.f32 %v32, %v209
    %214 = vst.msk [vmem:[#allocation5] sm:$0xff] %vm191, %v210
    %215 = vst.msk [vmem:[#allocation5 + $0x8] sm:$0xff] %vm191, %v211
    %216 = vst.msk [vmem:[#allocation5 + $0x10] sm:$0xff] %vm191, %v212
    %217 = vst.msk [vmem:[#allocation5 + $0x18] sm:$0xff] %vm191, %v213
    // Predicated region
    $region18: #{self_attention_pallas.1} parent=1 // pred_check
      _
    $region19: #{self_attention_pallas.1} parent=1 // pred_check_branch
      %219 = sbr.rel (0) target = $region21
    $region20: #{self_attention_pallas.1} parent=1 // pred_region
      %s221 = ssub.s32 512, 512
      %222 = vsyncadd [#allocation4], %s221
      %s223 = sshll.u32 [#allocation5], 4
      %s224 = int_to_ptr.vmem [resolvable:$true] %s223
      %229 = dma.vmem_to_hbm [thread:$0]  %s224, 512, %s3, [#allocation4], 128, 128, 8
    $region21: #{self_attention_pallas.1} parent=1 // pred_fallthru
      _
    // Predicated region
    $region22: #{self_attention_pallas.1} parent=1 // pred_check
      _
    $region23: #{self_attention_pallas.1} parent=1 // pred_check_branch
      %231 = sbr.rel (0) target = $region25
    $region24: #{self_attention_pallas.1} parent=1 // pred_region
      %232 = dma.done [#allocation4], 512
    $region25: #{self_attention_pallas.1} parent=1 // pred_fallthru
      _
    %233 = vsyncpa [#allocation3], 1
    %234 = vsyncpa [#allocation4], 1

</llo_original>
